<compile_context>
chip_gen: v6e
topology: v6e:2x2x1
jax: 0.10.0
libtpu: 0.0.40
codegen_flags: <defaults>
</compile_context>

<pallas_src>
import jax
import jax.numpy as jnp
from jax import lax
from jax.experimental import pallas as pl
from jax.experimental.pallas import tpu as pltpu

# ----------------------------- model dims (small, deterministic) -------------
B = 2       # batch
S = 8       # sequence length (includes prompt positions)
D = 32      # hidden size
F = 64      # FFN inner size
V = 128     # vocab size
N_SOFT = 4  # number of learnable soft-prompt tokens
BS = B * S  # batch folded into sublanes
LANE = 128  # TPU lane-tile width; q/k/v projections padded to lane boundaries


def _layernorm(x, g, b, eps=1e-5):
    mu = jnp.mean(x, axis=-1, keepdims=True)
    var = jnp.mean((x - mu) ** 2, axis=-1, keepdims=True)
    return (x - mu) * lax.rsqrt(var + eps) * g + b


def plm_kernel(x_ref, bias_ref, wqkv_ref, wo_ref, ln_ref,
               w1_ref, w2_ref, wlm_ref, out_ref):
    """Single invocation, whole batch at once.

    x_ref    : (B*S, D)        activations, batch folded into sublanes
    bias_ref : (B*S, B*S)      additive attention bias (block-diagonal batch
                               mask + key-padding mask combined)
    wqkv_ref : (D, 3*LANE)     fused Wq|Wk|Wv, each projection at a 128-lane
                               offset (pad lanes zero); 1/sqrt(D) folded into Wq
    wo_ref   : (LANE, D)       output projection, rows D..LANE-1 zero
    ln_ref   : (4, D)          rows: ln1_g, ln1_b, ln2_g, ln2_b
    out_ref  : (B*S, V)        lane-dense logits slab
    """
    x = x_ref[...]                           # (BS, D) float32
    bias = bias_ref[...]                     # (BS, BS)

    # --- self-attention (single head), fused lane-aligned QKV projection ---
    qkv = jnp.dot(x, wqkv_ref[...], preferred_element_type=jnp.float32)  # (BS, 3*LANE)
    q = qkv[:, 0:LANE]              # tile-aligned slices: no lane shuffles
    k = qkv[:, LANE:2 * LANE]       # lanes D..127 are zero -> inert in the dots
    v = qkv[:, 2 * LANE:3 * LANE]

    # contract dim 1 of both operands: no explicit transpose of k.
    scores = lax.dot_general(q, k, (((1,), (1,)), ((), ())),
                             preferred_element_type=jnp.float32)         # (BS, BS)
    scores = scores + bias

    m = jnp.max(scores, axis=-1, keepdims=True)
    e = jnp.exp(scores - m)
    # approx reciprocal lowers to the EUP vrcp slot (otherwise idle) — ~free.
    p = e * pl.reciprocal(jnp.sum(e, axis=-1, keepdims=True), approx=True)

    ctx = jnp.dot(p, v, preferred_element_type=jnp.float32)              # (BS, LANE), zero tail
    attn_out = jnp.dot(ctx, wo_ref[...], preferred_element_type=jnp.float32)  # (BS, D)

    # --- residual + LN (packed constants slab) ---
    g1 = ln_ref[0:1, :]
    b1 = ln_ref[1:2, :]
    g2 = ln_ref[2:3, :]
    b2 = ln_ref[3:4, :]
    h1 = _layernorm(x + attn_out, g1, b1)

    # --- FFN ---
    f = jnp.dot(h1, w1_ref[...], preferred_element_type=jnp.float32)     # (BS, F)
    f = jax.nn.gelu(f)
    f = jnp.dot(f, w2_ref[...], preferred_element_type=jnp.float32)      # (BS, D)

    h2 = _layernorm(h1 + f, g2, b2)

    # --- LM head: lane-dense (BS, V) store ---
    out_ref[...] = jnp.dot(h2, wlm_ref[...], preferred_element_type=jnp.float32)


def pack_params(params):
    """One-time packing of inference weights (done at init, NOT per call)."""
    scale = 1.0 / jnp.sqrt(jnp.float32(D))
    wqkv = jnp.zeros((D, 3 * LANE), jnp.float32)
    wqkv = wqkv.at[:, 0:D].set(params["wq"] * scale)        # fold attn scale into Q
    wqkv = wqkv.at[:, LANE:LANE + D].set(params["wk"])
    wqkv = wqkv.at[:, 2 * LANE:2 * LANE + D].set(params["wv"])
    wo_pad = jnp.zeros((LANE, D), jnp.float32).at[:D, :].set(params["wo"])
    ln = jnp.concatenate([params["ln1_g"], params["ln1_b"],
                          params["ln2_g"], params["ln2_b"]], axis=0)      # (4, D)
    return {
        "word_emb": params["word_emb"],
        "soft_emb": params["soft_emb"],
        "wqkv": wqkv,
        "wo": wo_pad,
        "ln": ln,
        "w1": params["w1"],
        "w2": params["w2"],
        "wlm": params["wlm"],
    }


@jax.jit
def prompt_model_forward(input_ids, soft_ids, attention_mask, packed):
    """Full PromptModel.forward: template.process_batch -> plm -> post_processing."""
    word_emb = packed["word_emb"]   # (V, D)
    soft_emb = packed["soft_emb"]   # (N_SOFT, D)

    # ---- Template.process_batch: soft-prompt embedding injection (glue) ----
    tok_e = jnp.take(word_emb, input_ids, axis=0)                         # (B,S,D)
    soft_e = jnp.take(soft_emb, jnp.clip(soft_ids - 1, 0, N_SOFT - 1), axis=0)
    is_soft = (soft_ids > 0)[..., None]
    inputs_embeds = jnp.where(is_soft, soft_e, tok_e).astype(jnp.float32)

    # fold batch into sublanes: (B,S,D) -> (B*S, D)
    x = inputs_embeds.reshape(BS, D)

    # combined additive attention bias over a (B*S, B*S) score matrix:
    #   same-batch key  -> key-padding bias (0 attended / -1e9 padded)
    #   cross-batch key -> -1e9  (block-diagonal attention == per-batch attention)
    pad = (1.0 - attention_mask.astype(jnp.float32)) * (-1e9)             # (B,S)
    key_pad = pad.reshape(BS)                                             # (BS,)
    batch_ids = jnp.repeat(jnp.arange(B, dtype=jnp.int32), S)             # (BS,)
    same_batch = batch_ids[:, None] == batch_ids[None, :]                 # (BS,BS)
    bias = jnp.where(same_batch, key_pad[None, :], jnp.float32(-1e9))     # (BS,BS)

    vmem = lambda: pl.BlockSpec(memory_space=pltpu.MemorySpace.VMEM)

    # ---- plm forward (Pallas hot path): single invocation, no grid ----
    logits_flat = pl.pallas_call(
        plm_kernel,
        out_shape=jax.ShapeDtypeStruct((BS, V), jnp.float32),
        in_specs=[vmem() for _ in range(8)],
        out_specs=vmem(),
    )(x, bias, packed["wqkv"], packed["wo"], packed["ln"],
      packed["w1"], packed["w2"], packed["wlm"])

    # ---- Template.post_processing_outputs: identity (restore (B,S,V)) ----
    return logits_flat.reshape(B, S, V)


def _reference(input_ids, soft_ids, attention_mask, params):
    """Pure-JAX reference for correctness checking (uses raw, unpacked params)."""
    word_emb, soft_emb = params["word_emb"], params["soft_emb"]
    tok_e = jnp.take(word_emb, input_ids, axis=0)
    soft_e = jnp.take(soft_emb, jnp.clip(soft_ids - 1, 0, N_SOFT - 1), axis=0)
    x = jnp.where((soft_ids > 0)[..., None], soft_e, tok_e).astype(jnp.float32)
    bias = (1.0 - attention_mask.astype(jnp.float32)) * (-1e9)

    q = x @ params["wq"]; k = x @ params["wk"]; v = x @ params["wv"]
    scores = jnp.einsum("bqd,bkd->bqk", q, k) / jnp.sqrt(jnp.float32(D))
    scores = scores + bias[:, None, :]
    p = jax.nn.softmax(scores, axis=-1)
    attn = jnp.einsum("bqk,bkd->bqd", p, v) @ params["wo"]
    h1 = _layernorm(x + attn, params["ln1_g"][0], params["ln1_b"][0])
    f = jax.nn.gelu(h1 @ params["w1"]) @ params["w2"]
    h2 = _layernorm(h1 + f, params["ln2_g"][0], params["ln2_b"][0])
    return h2 @ params["wlm"]


def init_params(key):
    ks = jax.random.split(key, 12)
    n = lambda k, shape, s: (jax.random.normal(k, shape, jnp.float32) * s)
    return {
        "word_emb": n(ks[0], (V, D), 0.02),
        "soft_emb": n(ks[1], (N_SOFT, D), 0.02),
        "wq": n(ks[2], (D, D), 0.05),
        "wk": n(ks[3], (D, D), 0.05),
        "wv": n(ks[4], (D, D), 0.05),
        "wo": n(ks[5], (D, D), 0.05),
        "ln1_g": jnp.ones((1, D), jnp.float32),
        "ln1_b": jnp.zeros((1, D), jnp.float32),
        "w1": n(ks[6], (D, F), 0.05),
        "w2": n(ks[7], (F, D), 0.05),
        "ln2_g": jnp.ones((1, D), jnp.float32),
        "ln2_b": jnp.zeros((1, D), jnp.float32),
        "wlm": n(ks[8], (D, V), 0.05),
    }


if __name__ == "__main__":
    key = jax.random.PRNGKey(0)
    kp, ki = jax.random.split(key)
    params = init_params(kp)
    packed = pack_params(params)   # one-time weight packing (fused QKV, LN slab)

    # batch: first N_SOFT positions are soft-prompt tokens, rest are word tokens
    input_ids = jax.random.randint(ki, (B, S), 0, V, dtype=jnp.int32)
    soft_ids = jnp.tile(
        jnp.concatenate([jnp.arange(1, N_SOFT + 1, dtype=jnp.int32),
                         jnp.zeros((S - N_SOFT,), jnp.int32)])[None, :], (B, 1))
    attention_mask = jnp.ones((B, S), jnp.int32).at[1, S - 2:].set(0)  # pad tail of sample 1

    logits = prompt_model_forward(input_ids, soft_ids, attention_mask, packed)
    logits = jax.block_until_ready(logits)

    ref = _reference(input_ids, soft_ids, attention_mask, params)
    assert logits.shape == (B, S, V)
    # tolerance loosened vs. 1e-4 because the softmax denom uses the EUP approx
    # reciprocal (~2^-12 relative error).
    assert jnp.allclose(logits, ref, atol=2e-3, rtol=2e-3), "mismatch vs reference"
    print("KERNEL_OK")
</pallas_src>

<mosaic_0001>
module attributes {stable_mosaic.version = 11 : i64} {
  func.func @plm_kernel(%arg0: memref<16x32xf32, #tpu.memory_space<vmem>>, %arg1: memref<16x16xf32, #tpu.memory_space<vmem>>, %arg2: memref<32x384xf32, #tpu.memory_space<vmem>>, %arg3: memref<128x32xf32, #tpu.memory_space<vmem>>, %arg4: memref<4x32xf32, #tpu.memory_space<vmem>>, %arg5: memref<32x64xf32, #tpu.memory_space<vmem>>, %arg6: memref<64x32xf32, #tpu.memory_space<vmem>>, %arg7: memref<32x128xf32, #tpu.memory_space<vmem>>, %arg8: memref<16x128xf32, #tpu.memory_space<vmem>>) attributes {dimension_semantics = [], scalar_prefetch = 0 : i64, scratch_operands = 0 : i64, tpu.core_type = #tpu.core_type<tc>} {
    %c0 = arith.constant 0 : index
    %c0_0 = arith.constant 0 : index
    %0 = vector.load %arg0[%c0, %c0_0] : memref<16x32xf32, #tpu.memory_space<vmem>>, vector<16x32xf32>
    %c0_1 = arith.constant 0 : index
    %c0_2 = arith.constant 0 : index
    %1 = vector.load %arg1[%c0_1, %c0_2] : memref<16x16xf32, #tpu.memory_space<vmem>>, vector<16x16xf32>
    %c0_3 = arith.constant 0 : index
    %c0_4 = arith.constant 0 : index
    %2 = vector.load %arg2[%c0_3, %c0_4] : memref<32x384xf32, #tpu.memory_space<vmem>>, vector<32x384xf32>
    %cst = arith.constant dense<0.000000e+00> : vector<16x384xf32>
    %3 = tpu.matmul %0, %2, %cst {dimension_numbers = #tpu.dot_dimension_numbers<[1], [0], [0], [1], [0, 0, 1, 1], [], []>} : vector<16x32xf32>, vector<32x384xf32>, vector<16x384xf32> -> vector<16x384xf32>
    %4 = vector.extract_strided_slice %3 {offsets = [0, 0], sizes = [16, 128], strides = [1, 1]} : vector<16x384xf32> to vector<16x128xf32>
    %5 = vector.extract_strided_slice %3 {offsets = [0, 128], sizes = [16, 128], strides = [1, 1]} : vector<16x384xf32> to vector<16x128xf32>
    %6 = vector.extract_strided_slice %3 {offsets = [0, 256], sizes = [16, 128], strides = [1, 1]} : vector<16x384xf32> to vector<16x128xf32>
    %cst_5 = arith.constant dense<0.000000e+00> : vector<16x16xf32>
    %7 = tpu.matmul %4, %5, %cst_5 {dimension_numbers = #tpu.dot_dimension_numbers<[1], [1], [0], [0], [0, 0, 1, 0], [], []>} : vector<16x128xf32>, vector<16x128xf32>, vector<16x16xf32> -> vector<16x16xf32>
    %8 = arith.addf %7, %1 : vector<16x16xf32>
    %cst_6 = arith.constant dense<0xFF800000> : vector<16xf32>
    %9 = vector.multi_reduction <maximumf>, %8, %cst_6 [1] : vector<16x16xf32> to vector<16xf32>
    %10 = vector.shape_cast %9 : vector<16xf32> to vector<16x1xf32>
    %11 = vector.broadcast %10 : vector<16x1xf32> to vector<16x16xf32>
    %12 = arith.subf %8, %11 : vector<16x16xf32>
    %13 = math.exp %12 : vector<16x16xf32>
    %cst_7 = arith.constant dense<0.000000e+00> : vector<16xf32>
    %14 = vector.multi_reduction <add>, %13, %cst_7 [1] : vector<16x16xf32> to vector<16xf32>
    %15 = vector.shape_cast %14 : vector<16xf32> to vector<16x1xf32>
    %16 = tpu.reciprocal %15 {approx = true} : vector<16x1xf32> -> vector<16x1xf32>
    %17 = vector.broadcast %16 : vector<16x1xf32> to vector<16x16xf32>
    %18 = arith.mulf %13, %17 : vector<16x16xf32>
    %cst_8 = arith.constant dense<0.000000e+00> : vector<16x128xf32>
    %19 = tpu.matmul %18, %6, %cst_8 {dimension_numbers = #tpu.dot_dimension_numbers<[1], [0], [0], [1], [0, 0, 1, 1], [], []>} : vector<16x16xf32>, vector<16x128xf32>, vector<16x128xf32> -> vector<16x128xf32>
    %c0_9 = arith.constant 0 : index
    %c0_10 = arith.constant 0 : index
    %20 = vector.load %arg3[%c0_9, %c0_10] : memref<128x32xf32, #tpu.memory_space<vmem>>, vector<128x32xf32>
    %cst_11 = arith.constant dense<0.000000e+00> : vector<16x32xf32>
    %21 = tpu.matmul %19, %20, %cst_11 {dimension_numbers = #tpu.dot_dimension_numbers<[1], [0], [0], [1], [0, 0, 1, 1], [], []>} : vector<16x128xf32>, vector<128x32xf32>, vector<16x32xf32> -> vector<16x32xf32>
    %c0_12 = arith.constant 0 : index
    %c0_13 = arith.constant 0 : index
    %22 = vector.load %arg4[%c0_12, %c0_13] : memref<4x32xf32, #tpu.memory_space<vmem>>, vector<1x32xf32>
    %c1 = arith.constant 1 : index
    %c0_14 = arith.constant 0 : index
    %23 = vector.load %arg4[%c1, %c0_14] : memref<4x32xf32, #tpu.memory_space<vmem>>, vector<1x32xf32>
    %c2 = arith.constant 2 : index
    %c0_15 = arith.constant 0 : index
    %24 = vector.load %arg4[%c2, %c0_15] : memref<4x32xf32, #tpu.memory_space<vmem>>, vector<1x32xf32>
    %c3 = arith.constant 3 : index
    %c0_16 = arith.constant 0 : index
    %25 = vector.load %arg4[%c3, %c0_16] : memref<4x32xf32, #tpu.memory_space<vmem>>, vector<1x32xf32>
    %26 = arith.addf %0, %21 : vector<16x32xf32>
    %cst_17 = arith.constant dense<0.000000e+00> : vector<16xf32>
    %27 = vector.multi_reduction <add>, %26, %cst_17 [1] : vector<16x32xf32> to vector<16xf32>
    %28 = vector.shape_cast %27 : vector<16xf32> to vector<16x1xf32>
    %cst_18 = arith.constant 3.200000e+01 : f32
    %29 = vector.broadcast %cst_18 : f32 to vector<16x1xf32>
    %30 = arith.divf %28, %29 : vector<16x1xf32>
    %31 = vector.broadcast %30 : vector<16x1xf32> to vector<16x32xf32>
    %32 = arith.subf %26, %31 : vector<16x32xf32>
    %33 = arith.mulf %32, %32 : vector<16x32xf32>
    %cst_19 = arith.constant dense<0.000000e+00> : vector<16xf32>
    %34 = vector.multi_reduction <add>, %33, %cst_19 [1] : vector<16x32xf32> to vector<16xf32>
    %35 = vector.shape_cast %34 : vector<16xf32> to vector<16x1xf32>
    %cst_20 = arith.constant 3.200000e+01 : f32
    %36 = vector.broadcast %cst_20 : f32 to vector<16x1xf32>
    %37 = arith.divf %35, %36 : vector<16x1xf32>
    %38 = vector.broadcast %30 : vector<16x1xf32> to vector<16x32xf32>
    %39 = arith.subf %26, %38 : vector<16x32xf32>
    %cst_21 = arith.constant 9.99999974E-6 : f32
    %40 = vector.broadcast %cst_21 : f32 to vector<16x1xf32>
    %41 = arith.addf %37, %40 : vector<16x1xf32>
    %42 = math.rsqrt %41 : vector<16x1xf32>
    %43 = vector.broadcast %42 : vector<16x1xf32> to vector<16x32xf32>
    %44 = arith.mulf %39, %43 : vector<16x32xf32>
    %45 = vector.broadcast %22 : vector<1x32xf32> to vector<16x32xf32>
    %46 = arith.mulf %44, %45 : vector<16x32xf32>
    %47 = vector.broadcast %23 : vector<1x32xf32> to vector<16x32xf32>
    %48 = arith.addf %46, %47 : vector<16x32xf32>
    %c0_22 = arith.constant 0 : index
    %c0_23 = arith.constant 0 : index
    %49 = vector.load %arg5[%c0_22, %c0_23] : memref<32x64xf32, #tpu.memory_space<vmem>>, vector<32x64xf32>
    %cst_24 = arith.constant dense<0.000000e+00> : vector<16x64xf32>
    %50 = tpu.matmul %48, %49, %cst_24 {dimension_numbers = #tpu.dot_dimension_numbers<[1], [0], [0], [1], [0, 0, 1, 1], [], []>} : vector<16x32xf32>, vector<32x64xf32>, vector<16x64xf32> -> vector<16x64xf32>
    %51 = arith.mulf %50, %50 : vector<16x64xf32>
    %52 = arith.mulf %50, %51 : vector<16x64xf32>
    %cst_25 = arith.constant 4.471500e-02 : f32
    %53 = vector.broadcast %cst_25 : f32 to vector<16x64xf32>
    %54 = arith.mulf %53, %52 : vector<16x64xf32>
    %55 = arith.addf %50, %54 : vector<16x64xf32>
    %cst_26 = arith.constant 0.797884583 : f32
    %56 = vector.broadcast %cst_26 : f32 to vector<16x64xf32>
    %57 = arith.mulf %56, %55 : vector<16x64xf32>
    %58 = math.tanh %57 : vector<16x64xf32>
    %cst_27 = arith.constant 1.000000e+00 : f32
    %59 = vector.broadcast %cst_27 : f32 to vector<16x64xf32>
    %60 = arith.addf %59, %58 : vector<16x64xf32>
    %cst_28 = arith.constant 5.000000e-01 : f32
    %61 = vector.broadcast %cst_28 : f32 to vector<16x64xf32>
    %62 = arith.mulf %61, %60 : vector<16x64xf32>
    %63 = arith.mulf %50, %62 : vector<16x64xf32>
    %c0_29 = arith.constant 0 : index
    %c0_30 = arith.constant 0 : index
    %64 = vector.load %arg6[%c0_29, %c0_30] : memref<64x32xf32, #tpu.memory_space<vmem>>, vector<64x32xf32>
    %cst_31 = arith.constant dense<0.000000e+00> : vector<16x32xf32>
    %65 = tpu.matmul %63, %64, %cst_31 {dimension_numbers = #tpu.dot_dimension_numbers<[1], [0], [0], [1], [0, 0, 1, 1], [], []>} : vector<16x64xf32>, vector<64x32xf32>, vector<16x32xf32> -> vector<16x32xf32>
    %66 = arith.addf %48, %65 : vector<16x32xf32>
    %cst_32 = arith.constant dense<0.000000e+00> : vector<16xf32>
    %67 = vector.multi_reduction <add>, %66, %cst_32 [1] : vector<16x32xf32> to vector<16xf32>
    %68 = vector.shape_cast %67 : vector<16xf32> to vector<16x1xf32>
    %cst_33 = arith.constant 3.200000e+01 : f32
    %69 = vector.broadcast %cst_33 : f32 to vector<16x1xf32>
    %70 = arith.divf %68, %69 : vector<16x1xf32>
    %71 = vector.broadcast %70 : vector<16x1xf32> to vector<16x32xf32>
    %72 = arith.subf %66, %71 : vector<16x32xf32>
    %73 = arith.mulf %72, %72 : vector<16x32xf32>
    %cst_34 = arith.constant dense<0.000000e+00> : vector<16xf32>
    %74 = vector.multi_reduction <add>, %73, %cst_34 [1] : vector<16x32xf32> to vector<16xf32>
    %75 = vector.shape_cast %74 : vector<16xf32> to vector<16x1xf32>
    %cst_35 = arith.constant 3.200000e+01 : f32
    %76 = vector.broadcast %cst_35 : f32 to vector<16x1xf32>
    %77 = arith.divf %75, %76 : vector<16x1xf32>
    %78 = vector.broadcast %70 : vector<16x1xf32> to vector<16x32xf32>
    %79 = arith.subf %66, %78 : vector<16x32xf32>
    %cst_36 = arith.constant 9.99999974E-6 : f32
    %80 = vector.broadcast %cst_36 : f32 to vector<16x1xf32>
    %81 = arith.addf %77, %80 : vector<16x1xf32>
    %82 = math.rsqrt %81 : vector<16x1xf32>
    %83 = vector.broadcast %82 : vector<16x1xf32> to vector<16x32xf32>
    %84 = arith.mulf %79, %83 : vector<16x32xf32>
    %85 = vector.broadcast %24 : vector<1x32xf32> to vector<16x32xf32>
    %86 = arith.mulf %84, %85 : vector<16x32xf32>
    %87 = vector.broadcast %25 : vector<1x32xf32> to vector<16x32xf32>
    %88 = arith.addf %86, %87 : vector<16x32xf32>
    %c0_37 = arith.constant 0 : index
    %c0_38 = arith.constant 0 : index
    %89 = vector.load %arg7[%c0_37, %c0_38] : memref<32x128xf32, #tpu.memory_space<vmem>>, vector<32x128xf32>
    %cst_39 = arith.constant dense<0.000000e+00> : vector<16x128xf32>
    %90 = tpu.matmul %88, %89, %cst_39 {dimension_numbers = #tpu.dot_dimension_numbers<[1], [0], [0], [1], [0, 0, 1, 1], [], []>} : vector<16x32xf32>, vector<32x128xf32>, vector<16x128xf32> -> vector<16x128xf32>
    %c0_40 = arith.constant 0 : index
    %c0_41 = arith.constant 0 : index
    %91 = vector.load %arg8[%c0_40, %c0_41] : memref<16x128xf32, #tpu.memory_space<vmem>>, vector<16x128xf32>
    tpu.vector_store %arg8[%c0_40, %c0_41], %90 {strides = array<i32>} : memref<16x128xf32, #tpu.memory_space<vmem>>, vector<16x128xf32>,
    return
  }
}

</mosaic_0001>

<llo_original>
// kernel: prompt_model_forward.1
$region0: #{prompt_model_forward.1}
  #allocation0 [shape = 'u32[]', space=smem, size = 0x4, offset = 0x4, fixed_abs, tag = 'smem constant byte address 0x4 - core index']
  #allocation1 [shape = 'u32[144,128]{1,0:T(1,128)}', space=vmem, size = 0x12000, scoped, tag = 'internal scratch']
  %s0 = inlined_call_operand.vmem [shape: f32[16,32], index: 0, kind: input, shape index: {}]
  %s1 = inlined_call_operand.vmem [shape: f32[16,16], index: 1, kind: input, shape index: {}]
  %s2 = inlined_call_operand.vmem [shape: f32[32,384], index: 2, kind: input, shape index: {}]
  %s3 = inlined_call_operand.vmem [shape: f32[128,32], index: 3, kind: input, shape index: {}]
  %s4 = inlined_call_operand.vmem [shape: f32[4,32], index: 4, kind: input, shape index: {}]
  %s5 = inlined_call_operand.vmem [shape: f32[32,64], index: 5, kind: input, shape index: {}]
  %s6 = inlined_call_operand.vmem [shape: f32[64,32], index: 6, kind: input, shape index: {}]
  %s7 = inlined_call_operand.vmem [shape: f32[32,128], index: 7, kind: input, shape index: {}]
  %s8 = inlined_call_operand.hbm [shape: f32[16,128], index: 8, kind: output, shape index: {}]
  %s9 = sld [smem:[#allocation0]]
  $region42: #{prompt_model_forward.1} parent=0
    _
  %s11 = ssub.s32 1, %s9
  %s12 = scalar_select 0, %s11, %s9
  $region1: #{prompt_model_forward.1} parent=0
    #allocation2 [shape = 'u8[8192]{0}', space=vmem, size = 0x2000, scoped, tag = 'output window, operand 0, single buffered']
    #allocation3 [shape = 's32[1]{0}', space=sflag, size = 0x4, scoped, tag = 'scoped memory for prompt_model_forward.1']
    %13 = vsyncpa [#allocation3], 0
    // Predicated region
    $region2: #{prompt_model_forward.1} parent=1 // pred_check
      _
    $region3: #{prompt_model_forward.1} parent=1 // pred_check_branch
      %15 = sbr.rel (0) target = $region5
    $region4: #{prompt_model_forward.1} parent=1 // pred_region
      _
    $region5: #{prompt_model_forward.1} parent=1 // pred_fallthru
      _
    // Predicated region
    $region6: #{prompt_model_forward.1} parent=1 // pred_check
      _
    $region7: #{prompt_model_forward.1} parent=1 // pred_check_branch
      %17 = sbr.rel (0) target = $region9
    $region8: #{prompt_model_forward.1} parent=1 // pred_region
      _
    $region9: #{prompt_model_forward.1} parent=1 // pred_fallthru
      _
    // Predicated region
    $region10: #{prompt_model_forward.1} parent=1 // pred_check
      _
    $region11: #{prompt_model_forward.1} parent=1 // pred_check_branch
      %19 = sbr.rel (0) target = $region13
    $region12: #{prompt_model_forward.1} parent=1 // pred_region
      _
    $region13: #{prompt_model_forward.1} parent=1 // pred_fallthru
      _
    // Predicated region
    $region14: #{prompt_model_forward.1} parent=1 // pred_check
      _
    $region15: #{prompt_model_forward.1} parent=1 // pred_check_branch
      %21 = sbr.rel (0) target = $region17
    $region16: #{prompt_model_forward.1} parent=1 // pred_region
      _
    $region17: #{prompt_model_forward.1} parent=1 // pred_fallthru
      _
    // Predicated region
    $region18: #{prompt_model_forward.1} parent=1 // pred_check
      _
    $region19: #{prompt_model_forward.1} parent=1 // pred_check_branch
      %23 = sbr.rel (0) target = $region21
    $region20: #{prompt_model_forward.1} parent=1 // pred_region
      _
    $region21: #{prompt_model_forward.1} parent=1 // pred_fallthru
      _
    // Predicated region
    $region22: #{prompt_model_forward.1} parent=1 // pred_check
      _
    $region23: #{prompt_model_forward.1} parent=1 // pred_check_branch
      %25 = sbr.rel (0) target = $region25
    $region24: #{prompt_model_forward.1} parent=1 // pred_region
      _
    $region25: #{prompt_model_forward.1} parent=1 // pred_fallthru
      _
    // Predicated region
    $region26: #{prompt_model_forward.1} parent=1 // pred_check
      _
    $region27: #{prompt_model_forward.1} parent=1 // pred_check_branch
      %27 = sbr.rel (0) target = $region29
    $region28: #{prompt_model_forward.1} parent=1 // pred_region
      _
    $region29: #{prompt_model_forward.1} parent=1 // pred_fallthru
      _
    // Predicated region
    $region30: #{prompt_model_forward.1} parent=1 // pred_check
      _
    $region31: #{prompt_model_forward.1} parent=1 // pred_check_branch
      %29 = sbr.rel (0) target = $region33
    $region32: #{prompt_model_forward.1} parent=1 // pred_region
      _
    $region33: #{prompt_model_forward.1} parent=1 // pred_fallthru
      _
    %v30 = vld [vmem:[%s0] sm:$0xff]
    %v31 = vld [vmem:[%s0 + $0x8] sm:$0xff]
    %v32 = vld [vmem:[%s1] sm:$0xff]
    %v33 = vld [vmem:[%s1 + $0x8] sm:$0xff]
    %v34 = vld [vmem:[%s2] sm:$0xff]
    %v35 = vld [vmem:[%s2 + $0x8] sm:$0xff]
    %v36 = vld [vmem:[%s2 + $0x10] sm:$0xff]
    %v37 = vld [vmem:[%s2 + $0x18] sm:$0xff]
    %v38 = vld [vmem:[%s2 + $0x20] sm:$0xff]
    %v39 = vld [vmem:[%s2 + $0x28] sm:$0xff]
    %v40 = vld [vmem:[%s2 + $0x30] sm:$0xff]
    %v41 = vld [vmem:[%s2 + $0x38] sm:$0xff]
    %v42 = vld [vmem:[%s2 + $0x40] sm:$0xff]
    %v43 = vld [vmem:[%s2 + $0x48] sm:$0xff]
    %v44 = vld [vmem:[%s2 + $0x50] sm:$0xff]
    %v45 = vld [vmem:[%s2 + $0x58] sm:$0xff]
    %vm46 = vcmask 261120
    %v48 = vsel %vm46, %v30, 0
    %v51 = vsel %vm46, %v31, 0
    %53 = vmatprep.subr.mxu0 0.0
    %54 = vmatpush1.msra.mxu0 0.0
    %55 = vmatprep.subr.mxu0 0.0
    %56 = vmatpush1.msra.mxu0 0.0
    %57 = vmatprep.subr.mxu0 0.0
    %58 = vmatpush1.msra.mxu0 0.0
    %59 = vmatprep.subr.mxu0 0.0
    %60 = vmatpush1.msra.mxu0 0.0
    %61 = vmatprep.subr.mxu0 0.0
    %62 = vmatpush1.msra.mxu0 0.0
    %63 = vmatprep.subr.mxu0 0.0
    %64 = vmatpush1.msra.mxu0 0.0
    %65 = vmatprep.subr.mxu0 0.0
    %66 = vmatpush1.msra.mxu0 0.0
    %67 = vmatprep.subr.mxu0 0.0
    %68 = vmatpush1.msra.mxu0 0.0
    %69 = vmatprep.subr.mxu0 0.0
    %70 = vmatpush1.msra.mxu0 0.0
    %71 = vmatprep.subr.mxu0 0.0
    %72 = vmatpush1.msra.mxu0 0.0
    %73 = vmatprep.subr.mxu0 0.0
    %74 = vmatpush1.msra.mxu0 0.0
    %75 = vmatprep.subr.mxu0 0.0
    %76 = vmatpush1.msra.mxu0 0.0
    %77 = vmatprep.subr.mxu0 %v44
    %78 = vmatpush1.msra.mxu0 %v43
    %79 = vmatprep.subr.mxu0 %v41
    %80 = vmatpush1.msra.mxu0 %v40
    %81 = vmatprep.subr.mxu0 %v38
    %82 = vmatpush1.msra.mxu0 %v37
    %83 = vmatprep.subr.mxu0 %v35
    %84 = vmatpush1.msra.mxu0 %v34
    %85 = vmatprep.subr.mxu0 0.0
    %86 = vmatpush2.msra.mxu0 0.0
    %87 = vmatprep.subr.mxu0 0.0
    %88 = vmatpush2.msra.mxu0 0.0
    %89 = vmatprep.subr.mxu0 0.0
    %90 = vmatpush2.msra.mxu0 0.0
    %91 = vmatprep.subr.mxu0 0.0
    %92 = vmatpush2.msra.mxu0 0.0
    %93 = vmatprep.subr.mxu0 0.0
    %94 = vmatpush2.msra.mxu0 0.0
    %95 = vmatprep.subr.mxu0 0.0
    %96 = vmatpush2.msra.mxu0 0.0
    %97 = vmatprep.subr.mxu0 0.0
    %98 = vmatpush2.msra.mxu0 0.0
    %99 = vmatprep.subr.mxu0 0.0
    %100 = vmatpush2.msra.mxu0 0.0
    %101 = vmatprep.subr.mxu0 0.0
    %102 = vmatpush2.msra.mxu0 0.0
    %103 = vmatprep.subr.mxu0 0.0
    %104 = vmatpush2.msra.mxu0 0.0
    %105 = vmatprep.subr.mxu0 0.0
    %106 = vmatpush2.msra.mxu0 0.0
    %107 = vmatprep.subr.mxu0 0.0
    %108 = vmatpush2.msra.mxu0 0.0
    %109 = vmatprep.subr.mxu0 0.0
    %110 = vmatpush2.msra.mxu0 0.0
    %111 = vmatprep.subr.mxu0 0.0
    %112 = vmatpush2.msra.mxu0 0.0
    %113 = vmatprep.subr.mxu0 0.0
    %114 = vmatpush2.msra.mxu0 0.0
    %115 = vmatprep.subr.mxu0 0.0
    %116 = vmatpush2.msra.mxu0 0.0
    %117 = vmatprep.mubr.f32.mxu0 0.0
    %118 = vmatmul.mubr.f32.gmra.mxu0 %v48
    %v119 = vpop.f32.mrf.mxu0
    %v120 = vadd.f32 0.0, %v119
    %v121 = vpop.f32.mrf.mxu0
    %v122 = vadd.f32 0.0, %v121
    %123 = vmatprep.mubr.f32.mxu0 0.0
    %124 = vmatmul.mubr.f32.gmra.mxu0 %v51
    %v125 = vpop.f32.mrf.mxu0
    %v126 = vadd.f32 0.0, %v125
    %v127 = vpop.f32.mrf.mxu0
    %v128 = vadd.f32 0.0, %v127
    %129 = vdwg.mxu0
    %130 = vmatprep.subr.mxu0 0.0
    %131 = vmatpush1.msra.mxu0 0.0
    %132 = vmatprep.subr.mxu0 0.0
    %133 = vmatpush1.msra.mxu0 0.0
    %134 = vmatprep.subr.mxu0 0.0
    %135 = vmatpush1.msra.mxu0 0.0
    %136 = vmatprep.subr.mxu0 0.0
    %137 = vmatpush1.msra.mxu0 0.0
    %138 = vmatprep.subr.mxu0 0.0
    %139 = vmatpush1.msra.mxu0 0.0
    %140 = vmatprep.subr.mxu0 0.0
    %141 = vmatpush1.msra.mxu0 0.0
    %142 = vmatprep.subr.mxu0 0.0
    %143 = vmatpush1.msra.mxu0 0.0
    %144 = vmatprep.subr.mxu0 0.0
    %145 = vmatpush1.msra.mxu0 0.0
    %146 = vmatprep.subr.mxu0 0.0
    %147 = vmatpush1.msra.mxu0 0.0
    %148 = vmatprep.subr.mxu0 0.0
    %149 = vmatpush1.msra.mxu0 0.0
    %150 = vmatprep.subr.mxu0 0.0
    %151 = vmatpush1.msra.mxu0 0.0
    %152 = vmatprep.subr.mxu0 0.0
    %153 = vmatpush1.msra.mxu0 0.0
    %154 = vmatprep.subr.mxu0 0.0
    %155 = vmatpush1.msra.mxu0 %v45
    %156 = vmatprep.subr.mxu0 0.0
    %157 = vmatpush1.msra.mxu0 %v42
    %158 = vmatprep.subr.mxu0 0.0
    %159 = vmatpush1.msra.mxu0 %v39
    %160 = vmatprep.subr.mxu0 0.0
    %161 = vmatpush1.msra.mxu0 %v36
    %162 = vmatprep.subr.mxu0 0.0
    %163 = vmatpush2.msra.mxu0 0.0
    %164 = vmatprep.subr.mxu0 0.0
    %165 = vmatpush2.msra.mxu0 0.0
    %166 = vmatprep.subr.mxu0 0.0
    %167 = vmatpush2.msra.mxu0 0.0
    %168 = vmatprep.subr.mxu0 0.0
    %169 = vmatpush2.msra.mxu0 0.0
    %170 = vmatprep.subr.mxu0 0.0
    %171 = vmatpush2.msra.mxu0 0.0
    %172 = vmatprep.subr.mxu0 0.0
    %173 = vmatpush2.msra.mxu0 0.0
    %174 = vmatprep.subr.mxu0 0.0
    %175 = vmatpush2.msra.mxu0 0.0
    %176 = vmatprep.subr.mxu0 0.0
    %177 = vmatpush2.msra.mxu0 0.0
    %178 = vmatprep.subr.mxu0 0.0
    %179 = vmatpush2.msra.mxu0 0.0
    %180 = vmatprep.subr.mxu0 0.0
    %181 = vmatpush2.msra.mxu0 0.0
    %182 = vmatprep.subr.mxu0 0.0
    %183 = vmatpush2.msra.mxu0 0.0
    %184 = vmatprep.subr.mxu0 0.0
    %185 = vmatpush2.msra.mxu0 0.0
    %186 = vmatprep.subr.mxu0 0.0
    %187 = vmatpush2.msra.mxu0 0.0
    %188 = vmatprep.subr.mxu0 0.0
    %189 = vmatpush2.msra.mxu0 0.0
    %190 = vmatprep.subr.mxu0 0.0
    %191 = vmatpush2.msra.mxu0 0.0
    %192 = vmatprep.subr.mxu0 0.0
    %193 = vmatpush2.msra.mxu0 0.0
    %194 = vmatprep.mubr.f32.mxu0 0.0
    %195 = vmatmul.mubr.f32.gmra.mxu0 %v48
    %v196 = vpop.f32.mrf.mxu0
    %v197 = vadd.f32 0.0, %v196
    %v198 = vpop.f32.mrf.mxu0
    %199 = vmatprep.mubr.f32.mxu0 0.0
    %200 = vmatmul.mubr.f32.gmra.mxu0 %v51
    %v201 = vpop.f32.mrf.mxu0
    %v202 = vadd.f32 0.0, %v201
    %v203 = vpop.f32.mrf.mxu0
    %204 = vdwg.mxu0
    %205 = vmatprep.subr.mxu0 0.0
    %206 = vmatpush1.xpose.msra.mxu0 0.0
    %207 = vmatprep.subr.mxu0 0.0
    %208 = vmatpush1.xpose.msra.mxu0 0.0
    %209 = vmatprep.subr.mxu0 0.0
    %210 = vmatpush1.xpose.msra.mxu0 0.0
    %211 = vmatprep.subr.mxu0 0.0
    %212 = vmatpush1.xpose.msra.mxu0 0.0
    %213 = vmatprep.subr.mxu0 0.0
    %214 = vmatpush1.xpose.msra.mxu0 0.0
    %215 = vmatprep.subr.mxu0 0.0
    %216 = vmatpush1.xpose.msra.mxu0 0.0
    %217 = vmatprep.subr.mxu0 0.0
    %218 = vmatpush1.xpose.msra.mxu0 0.0
    %219 = vmatprep.subr.mxu0 0.0
    %220 = vmatpush1.xpose.msra.mxu0 0.0
    %221 = vmatprep.subr.mxu0 0.0
    %222 = vmatpush1.xpose.msra.mxu0 0.0
    %223 = vmatprep.subr.mxu0 0.0
    %224 = vmatpush1.xpose.msra.mxu0 0.0
    %225 = vmatprep.subr.mxu0 0.0
    %226 = vmatpush1.xpose.msra.mxu0 0.0
    %227 = vmatprep.subr.mxu0 0.0
    %228 = vmatpush1.xpose.msra.mxu0 0.0
    %229 = vmatprep.subr.mxu0 0.0
    %230 = vmatpush1.xpose.msra.mxu0 0.0
    %231 = vmatprep.subr.mxu0 0.0
    %232 = vmatpush1.xpose.msra.mxu0 0.0
    %233 = vmatprep.subr.mxu0 0.0
    %234 = vmatpush1.xpose.msra.mxu0 %v128
    %235 = vmatprep.subr.mxu0 0.0
    %236 = vmatpush1.xpose.msra.mxu0 %v122
    %237 = vmatprep.subr.mxu0 0.0
    %238 = vmatpush2.xpose.msra.mxu0 0.0
    %239 = vmatprep.subr.mxu0 0.0
    %240 = vmatpush2.xpose.msra.mxu0 0.0
    %241 = vmatprep.subr.mxu0 0.0
    %242 = vmatpush2.xpose.msra.mxu0 0.0
    %243 = vmatprep.subr.mxu0 0.0
    %244 = vmatpush2.xpose.msra.mxu0 0.0
    %245 = vmatprep.subr.mxu0 0.0
    %246 = vmatpush2.xpose.msra.mxu0 0.0
    %247 = vmatprep.subr.mxu0 0.0
    %248 = vmatpush2.xpose.msra.mxu0 0.0
    %249 = vmatprep.subr.mxu0 0.0
    %250 = vmatpush2.xpose.msra.mxu0 0.0
    %251 = vmatprep.subr.mxu0 0.0
    %252 = vmatpush2.xpose.msra.mxu0 0.0
    %253 = vmatprep.subr.mxu0 0.0
    %254 = vmatpush2.xpose.msra.mxu0 0.0
    %255 = vmatprep.subr.mxu0 0.0
    %256 = vmatpush2.xpose.msra.mxu0 0.0
    %257 = vmatprep.subr.mxu0 0.0
    %258 = vmatpush2.xpose.msra.mxu0 0.0
    %259 = vmatprep.subr.mxu0 0.0
    %260 = vmatpush2.xpose.msra.mxu0 0.0
    %261 = vmatprep.subr.mxu0 0.0
    %262 = vmatpush2.xpose.msra.mxu0 0.0
    %263 = vmatprep.subr.mxu0 0.0
    %264 = vmatpush2.xpose.msra.mxu0 0.0
    %265 = vmatprep.subr.mxu0 0.0
    %266 = vmatpush2.xpose.msra.mxu0 0.0
    %267 = vmatprep.subr.mxu0 0.0
    %268 = vmatpush2.xpose.msra.mxu0 0.0
    %269 = vmatprep.mubr.f32.mxu0 0.0
    %270 = vmatmul.mubr.f32.gmra.mxu0 %v120
    %v271 = vpop.f32.mrf.mxu0
    %v272 = vadd.f32 %v32, %v271
    %v273 = vpop.f32.mrf.mxu0
    %274 = vmatprep.mubr.f32.mxu0 0.0
    %275 = vmatmul.mubr.f32.gmra.mxu0 %v126
    %v276 = vpop.f32.mrf.mxu0
    %v277 = vadd.f32 %v33, %v276
    %v278 = vpop.f32.mrf.mxu0
    %279 = vdwg.mxu0
    %vm280 = vcmask 130048
    %v281 = vsel %vm280, %v272, -inf
    %282 = vmax.xlane.f32.xlu0 %v281
    %v283 = vpop.xlane.xlu0 %282
    %v284 = vsel %vm280, %v277, -inf
    %285 = vmax.xlane.f32.xlu0 %v284
    %v286 = vpop.xlane.xlu0 %285
    %v287 = vsub.f32 %v272, %v283
    %v288 = vsub.f32 %v277, %v286
    %v289 = vmul.f32 %v287, 1.442695
    %v290 = vpow.pop %v289
    %v291 = vmul.f32 %v288, 1.442695
    %v292 = vpow.pop %v291
    %v293 = vsel %vm280, %v290, 0.0
    %294 = vadd.xlane.f32.xlu0 %v293
    %v295 = vpop.xlane.xlu0 %294
    %v296 = vsel %vm280, %v292, 0.0
    %297 = vadd.xlane.f32.xlu0 %v296
    %v298 = vpop.xlane.xlu0 %297
    %v299 = vrcp.pop %v295
    %v300 = vrcp.pop %v298
    %v301 = vmul.f32 %v290, %v299
    %v302 = vmul.f32 %v292, %v300
    %v304 = vsel %vm280, %v301, 0
    %v307 = vsel %vm280, %v302, 0
    %309 = vmatprep.subr.mxu0 0.0
    %310 = vmatpush1.msra.mxu0 0.0
    %311 = vmatprep.subr.mxu0 0.0
    %312 = vmatpush1.msra.mxu0 0.0
    %313 = vmatprep.subr.mxu0 0.0
    %314 = vmatpush1.msra.mxu0 0.0
    %315 = vmatprep.subr.mxu0 0.0
    %316 = vmatpush1.msra.mxu0 0.0
    %317 = vmatprep.subr.mxu0 0.0
    %318 = vmatpush1.msra.mxu0 0.0
    %319 = vmatprep.subr.mxu0 0.0
    %320 = vmatpush1.msra.mxu0 0.0
    %321 = vmatprep.subr.mxu0 0.0
    %322 = vmatpush1.msra.mxu0 0.0
    %323 = vmatprep.subr.mxu0 0.0
    %324 = vmatpush1.msra.mxu0 0.0
    %325 = vmatprep.subr.mxu0 0.0
    %326 = vmatpush1.msra.mxu0 0.0
    %327 = vmatprep.subr.mxu0 0.0
    %328 = vmatpush1.msra.mxu0 0.0
    %329 = vmatprep.subr.mxu0 0.0
    %330 = vmatpush1.msra.mxu0 0.0
    %331 = vmatprep.subr.mxu0 0.0
    %332 = vmatpush1.msra.mxu0 0.0
    %333 = vmatprep.subr.mxu0 0.0
    %334 = vmatpush1.msra.mxu0 0.0
    %335 = vmatprep.subr.mxu0 0.0
    %336 = vmatpush1.msra.mxu0 0.0
    %337 = vmatprep.subr.mxu0 0.0
    %338 = vmatpush1.msra.mxu0 %v202
    %339 = vmatprep.subr.mxu0 0.0
    %340 = vmatpush1.msra.mxu0 %v197
    %341 = vmatprep.subr.mxu0 0.0
    %342 = vmatpush2.msra.mxu0 0.0
    %343 = vmatprep.subr.mxu0 0.0
    %344 = vmatpush2.msra.mxu0 0.0
    %345 = vmatprep.subr.mxu0 0.0
    %346 = vmatpush2.msra.mxu0 0.0
    %347 = vmatprep.subr.mxu0 0.0
    %348 = vmatpush2.msra.mxu0 0.0
    %349 = vmatprep.subr.mxu0 0.0
    %350 = vmatpush2.msra.mxu0 0.0
    %351 = vmatprep.subr.mxu0 0.0
    %352 = vmatpush2.msra.mxu0 0.0
    %353 = vmatprep.subr.mxu0 0.0
    %354 = vmatpush2.msra.mxu0 0.0
    %355 = vmatprep.subr.mxu0 0.0
    %356 = vmatpush2.msra.mxu0 0.0
    %357 = vmatprep.subr.mxu0 0.0
    %358 = vmatpush2.msra.mxu0 0.0
    %359 = vmatprep.subr.mxu0 0.0
    %360 = vmatpush2.msra.mxu0 0.0
    %361 = vmatprep.subr.mxu0 0.0
    %362 = vmatpush2.msra.mxu0 0.0
    %363 = vmatprep.subr.mxu0 0.0
    %364 = vmatpush2.msra.mxu0 0.0
    %365 = vmatprep.subr.mxu0 0.0
    %366 = vmatpush2.msra.mxu0 0.0
    %367 = vmatprep.subr.mxu0 0.0
    %368 = vmatpush2.msra.mxu0 0.0
    %369 = vmatprep.subr.mxu0 0.0
    %370 = vmatpush2.msra.mxu0 0.0
    %371 = vmatprep.subr.mxu0 0.0
    %372 = vmatpush2.msra.mxu0 0.0
    %373 = vmatprep.mubr.f32.mxu0 0.0
    %374 = vmatmul.mubr.f32.gmra.mxu0 %v304
    %v375 = vpop.f32.mrf.mxu0
    %v376 = vadd.f32 0.0, %v375
    %v377 = vpop.f32.mrf.mxu0
    %378 = vmatprep.mubr.f32.mxu0 0.0
    %379 = vmatmul.mubr.f32.gmra.mxu0 %v307
    %v380 = vpop.f32.mrf.mxu0
    %v381 = vadd.f32 0.0, %v380
    %v382 = vpop.f32.mrf.mxu0
    %383 = vdwg.mxu0
    %v384 = vld [vmem:[%s3] sm:$0xff]
    %v385 = vld [vmem:[%s3 + $0x8] sm:$0xff]
    %v386 = vld [vmem:[%s3 + $0x10] sm:$0xff]
    %v387 = vld [vmem:[%s3 + $0x18] sm:$0xff]
    %v388 = vld [vmem:[%s3 + $0x20] sm:$0xff]
    %v389 = vld [vmem:[%s3 + $0x28] sm:$0xff]
    %v390 = vld [vmem:[%s3 + $0x30] sm:$0xff]
    %v391 = vld [vmem:[%s3 + $0x38] sm:$0xff]
    %v392 = vld [vmem:[%s3 + $0x40] sm:$0xff]
    %v393 = vld [vmem:[%s3 + $0x48] sm:$0xff]
    %v394 = vld [vmem:[%s3 + $0x50] sm:$0xff]
    %v395 = vld [vmem:[%s3 + $0x58] sm:$0xff]
    %v396 = vld [vmem:[%s3 + $0x60] sm:$0xff]
    %v397 = vld [vmem:[%s3 + $0x68] sm:$0xff]
    %v398 = vld [vmem:[%s3 + $0x70] sm:$0xff]
    %v399 = vld [vmem:[%s3 + $0x78] sm:$0xff]
    %400 = vmatprep.subr.mxu0 0.0
    %401 = vmatpush1.msra.mxu0 %v399
    %402 = vmatprep.subr.mxu0 0.0
    %403 = vmatpush1.msra.mxu0 %v398
    %404 = vmatprep.subr.mxu0 0.0
    %405 = vmatpush1.msra.mxu0 %v397
    %406 = vmatprep.subr.mxu0 0.0
    %407 = vmatpush1.msra.mxu0 %v396
    %408 = vmatprep.subr.mxu0 0.0
    %409 = vmatpush1.msra.mxu0 %v395
    %410 = vmatprep.subr.mxu0 0.0
    %411 = vmatpush1.msra.mxu0 %v394
    %412 = vmatprep.subr.mxu0 0.0
    %413 = vmatpush1.msra.mxu0 %v393
    %414 = vmatprep.subr.mxu0 0.0
    %415 = vmatpush1.msra.mxu0 %v392
    %416 = vmatprep.subr.mxu0 0.0
    %417 = vmatpush1.msra.mxu0 %v391
    %418 = vmatprep.subr.mxu0 0.0
    %419 = vmatpush1.msra.mxu0 %v390
    %420 = vmatprep.subr.mxu0 0.0
    %421 = vmatpush1.msra.mxu0 %v389
    %422 = vmatprep.subr.mxu0 0.0
    %423 = vmatpush1.msra.mxu0 %v388
    %424 = vmatprep.subr.mxu0 0.0
    %425 = vmatpush1.msra.mxu0 %v387
    %426 = vmatprep.subr.mxu0 0.0
    %427 = vmatpush1.msra.mxu0 %v386
    %428 = vmatprep.subr.mxu0 0.0
    %429 = vmatpush1.msra.mxu0 %v385
    %430 = vmatprep.subr.mxu0 0.0
    %431 = vmatpush1.msra.mxu0 %v384
    %432 = vmatprep.subr.mxu0 0.0
    %433 = vmatpush2.msra.mxu0 0.0
    %434 = vmatprep.subr.mxu0 0.0
    %435 = vmatpush2.msra.mxu0 0.0
    %436 = vmatprep.subr.mxu0 0.0
    %437 = vmatpush2.msra.mxu0 0.0
    %438 = vmatprep.subr.mxu0 0.0
    %439 = vmatpush2.msra.mxu0 0.0
    %440 = vmatprep.subr.mxu0 0.0
    %441 = vmatpush2.msra.mxu0 0.0
    %442 = vmatprep.subr.mxu0 0.0
    %443 = vmatpush2.msra.mxu0 0.0
    %444 = vmatprep.subr.mxu0 0.0
    %445 = vmatpush2.msra.mxu0 0.0
    %446 = vmatprep.subr.mxu0 0.0
    %447 = vmatpush2.msra.mxu0 0.0
    %448 = vmatprep.subr.mxu0 0.0
    %449 = vmatpush2.msra.mxu0 0.0
    %450 = vmatprep.subr.mxu0 0.0
    %451 = vmatpush2.msra.mxu0 0.0
    %452 = vmatprep.subr.mxu0 0.0
    %453 = vmatpush2.msra.mxu0 0.0
    %454 = vmatprep.subr.mxu0 0.0
    %455 = vmatpush2.msra.mxu0 0.0
    %456 = vmatprep.subr.mxu0 0.0
    %457 = vmatpush2.msra.mxu0 0.0
    %458 = vmatprep.subr.mxu0 0.0
    %459 = vmatpush2.msra.mxu0 0.0
    %460 = vmatprep.subr.mxu0 0.0
    %461 = vmatpush2.msra.mxu0 0.0
    %462 = vmatprep.subr.mxu0 0.0
    %463 = vmatpush2.msra.mxu0 0.0
    %464 = vmatprep.mubr.f32.mxu0 0.0
    %465 = vmatmul.mubr.f32.gmra.mxu0 %v376
    %v466 = vpop.f32.mrf.mxu0
    %v467 = vadd.f32 0.0, %v466
    %v468 = vpop.f32.mrf.mxu0
    %469 = vmatprep.mubr.f32.mxu0 0.0
    %470 = vmatmul.mubr.f32.gmra.mxu0 %v381
    %v471 = vpop.f32.mrf.mxu0
    %v472 = vadd.f32 0.0, %v471
    %v473 = vpop.f32.mrf.mxu0
    %474 = vdwg.mxu0
    %v475 = vld [vmem:[%s4] sm:$0x1]
    %v476 = vld [vmem:[%s4 + $0x1] sm:$0x1]
    %v477 = vld [vmem:[%s4 + $0x2] sm:$0x1]
    %v478 = vld [vmem:[%s4 + $0x3] sm:$0x1]
    %v479 = vadd.f32 %v30, %v467
    %v480 = vadd.f32 %v31, %v472
    %v481 = vsel %vm46, %v479, 0.0
    %482 = vadd.xlane.f32.xlu0 %v481
    %v483 = vpop.xlane.xlu0 %482
    %v484 = vsel %vm46, %v480, 0.0
    %485 = vadd.xlane.f32.xlu0 %v484
    %v486 = vpop.xlane.xlu0 %485
    %v487 = vrcp.pop 32.0
    %v488 = vmul.f32 %v483, %v487
    %v489 = vmul.f32 %v486, %v487
    %v490 = vsub.f32 %v479, %v488
    %v491 = vsub.f32 %v480, %v489
    %v492 = vmul.f32 %v490, %v490
    %v493 = vmul.f32 %v491, %v491
    %v494 = vsel %vm46, %v492, 0.0
    %495 = vadd.xlane.f32.xlu0 %v494
    %v496 = vpop.xlane.xlu0 %495
    %v497 = vsel %vm46, %v493, 0.0
    %498 = vadd.xlane.f32.xlu0 %v497
    %v499 = vpop.xlane.xlu0 %498
    %v500 = vmul.f32 %v496, %v487
    %v501 = vmul.f32 %v499, %v487
    %v502 = vadd.f32 %v500, 1e-05
    %v503 = vadd.f32 %v501, 1e-05
    %v504 = vrsqrt.pop %v502
    %v505 = vrsqrt.pop %v503
    %v506 = vmul.f32 %v490, %v504
    %v507 = vmul.f32 %v491, %v505
    %v508 = vlaneseq
    %v509 = vshrl.u32 %v508, 7
    %v510 = vsub.s32 0, %v509
    %v511 = vrot.slane %v475, %v510
    %v512 = vmul.f32 %v506, %v511
    %v513 = vmul.f32 %v507, %v511
    %v514 = vlaneseq
    %v515 = vshrl.u32 %v514, 7
    %v516 = vsub.s32 0, %v515
    %v517 = vrot.slane %v476, %v516
    %v518 = vadd.f32 %v512, %v517
    %v519 = vadd.f32 %v513, %v517
    %v520 = vld [vmem:[%s5] sm:$0xff]
    %v521 = vld [vmem:[%s5 + $0x8] sm:$0xff]
    %v522 = vld [vmem:[%s5 + $0x10] sm:$0xff]
    %v523 = vld [vmem:[%s5 + $0x18] sm:$0xff]
    %v525 = vsel %vm46, %v518, 0
    %v528 = vsel %vm46, %v519, 0
    %530 = vmatprep.subr.mxu0 0.0
    %531 = vmatpush1.msra.mxu0 0.0
    %532 = vmatprep.subr.mxu0 0.0
    %533 = vmatpush1.msra.mxu0 0.0
    %534 = vmatprep.subr.mxu0 0.0
    %535 = vmatpush1.msra.mxu0 0.0
    %536 = vmatprep.subr.mxu0 0.0
    %537 = vmatpush1.msra.mxu0 0.0
    %538 = vmatprep.subr.mxu0 0.0
    %539 = vmatpush1.msra.mxu0 0.0
    %540 = vmatprep.subr.mxu0 0.0
    %541 = vmatpush1.msra.mxu0 0.0
    %542 = vmatprep.subr.mxu0 0.0
    %543 = vmatpush1.msra.mxu0 0.0
    %544 = vmatprep.subr.mxu0 0.0
    %545 = vmatpush1.msra.mxu0 0.0
    %546 = vmatprep.subr.mxu0 0.0
    %547 = vmatpush1.msra.mxu0 0.0
    %548 = vmatprep.subr.mxu0 0.0
    %549 = vmatpush1.msra.mxu0 0.0
    %550 = vmatprep.subr.mxu0 0.0
    %551 = vmatpush1.msra.mxu0 0.0
    %552 = vmatprep.subr.mxu0 0.0
    %553 = vmatpush1.msra.mxu0 0.0
    %554 = vmatprep.subr.mxu0 0.0
    %555 = vmatpush1.msra.mxu0 %v523
    %556 = vmatprep.subr.mxu0 0.0
    %557 = vmatpush1.msra.mxu0 %v522
    %558 = vmatprep.subr.mxu0 0.0
    %559 = vmatpush1.msra.mxu0 %v521
    %560 = vmatprep.subr.mxu0 0.0
    %561 = vmatpush1.msra.mxu0 %v520
    %562 = vmatprep.subr.mxu0 0.0
    %563 = vmatpush2.msra.mxu0 0.0
    %564 = vmatprep.subr.mxu0 0.0
    %565 = vmatpush2.msra.mxu0 0.0
    %566 = vmatprep.subr.mxu0 0.0
    %567 = vmatpush2.msra.mxu0 0.0
    %568 = vmatprep.subr.mxu0 0.0
    %569 = vmatpush2.msra.mxu0 0.0
    %570 = vmatprep.subr.mxu0 0.0
    %571 = vmatpush2.msra.mxu0 0.0
    %572 = vmatprep.subr.mxu0 0.0
    %573 = vmatpush2.msra.mxu0 0.0
    %574 = vmatprep.subr.mxu0 0.0
    %575 = vmatpush2.msra.mxu0 0.0
    %576 = vmatprep.subr.mxu0 0.0
    %577 = vmatpush2.msra.mxu0 0.0
    %578 = vmatprep.subr.mxu0 0.0
    %579 = vmatpush2.msra.mxu0 0.0
    %580 = vmatprep.subr.mxu0 0.0
    %581 = vmatpush2.msra.mxu0 0.0
    %582 = vmatprep.subr.mxu0 0.0
    %583 = vmatpush2.msra.mxu0 0.0
    %584 = vmatprep.subr.mxu0 0.0
    %585 = vmatpush2.msra.mxu0 0.0
    %586 = vmatprep.subr.mxu0 0.0
    %587 = vmatpush2.msra.mxu0 0.0
    %588 = vmatprep.subr.mxu0 0.0
    %589 = vmatpush2.msra.mxu0 0.0
    %590 = vmatprep.subr.mxu0 0.0
    %591 = vmatpush2.msra.mxu0 0.0
    %592 = vmatprep.subr.mxu0 0.0
    %593 = vmatpush2.msra.mxu0 0.0
    %594 = vmatprep.mubr.f32.mxu0 0.0
    %595 = vmatmul.mubr.f32.gmra.mxu0 %v525
    %v596 = vpop.f32.mrf.mxu0
    %v597 = vadd.f32 0.0, %v596
    %v598 = vpop.f32.mrf.mxu0
    %599 = vmatprep.mubr.f32.mxu0 0.0
    %600 = vmatmul.mubr.f32.gmra.mxu0 %v528
    %v601 = vpop.f32.mrf.mxu0
    %v602 = vadd.f32 0.0, %v601
    %v603 = vpop.f32.mrf.mxu0
    %604 = vdwg.mxu0
    %v605 = vmul.f32 %v597, %v597
    %v606 = vmul.f32 %v602, %v602
    %v607 = vmul.f32 %v597, %v605
    %v608 = vmul.f32 %v602, %v606
    %v609 = vmul.f32 %v607, 0.044715
    %v610 = vmul.f32 %v608, 0.044715
    %v611 = vadd.f32 %v597, %v609
    %v612 = vadd.f32 %v602, %v610
    %v613 = vmul.f32 %v611, 0.7978846
    %v614 = vmul.f32 %v612, 0.7978846
    %v615 = vtanh.pop %v613
    %v616 = vtanh.pop %v614
    %v617 = vadd.f32 %v615, 1.0
    %v618 = vadd.f32 %v616, 1.0
    %v619 = vmul.f32 %v617, 0.5
    %v620 = vmul.f32 %v618, 0.5
    %v621 = vmul.f32 %v597, %v619
    %v622 = vmul.f32 %v602, %v620
    %v623 = vld [vmem:[%s6] sm:$0xff]
    %v624 = vld [vmem:[%s6 + $0x8] sm:$0xff]
    %v625 = vld [vmem:[%s6 + $0x10] sm:$0xff]
    %v626 = vld [vmem:[%s6 + $0x18] sm:$0xff]
    %v627 = vld [vmem:[%s6 + $0x20] sm:$0xff]
    %v628 = vld [vmem:[%s6 + $0x28] sm:$0xff]
    %v629 = vld [vmem:[%s6 + $0x30] sm:$0xff]
    %v630 = vld [vmem:[%s6 + $0x38] sm:$0xff]
    %vm631 = vcmask 523264
    %v633 = vsel %vm631, %v621, 0
    %v636 = vsel %vm631, %v622, 0
    %638 = vmatprep.subr.mxu0 0.0
    %639 = vmatpush1.msra.mxu0 0.0
    %640 = vmatprep.subr.mxu0 0.0
    %641 = vmatpush1.msra.mxu0 0.0
    %642 = vmatprep.subr.mxu0 0.0
    %643 = vmatpush1.msra.mxu0 0.0
    %644 = vmatprep.subr.mxu0 0.0
    %645 = vmatpush1.msra.mxu0 0.0
    %646 = vmatprep.subr.mxu0 0.0
    %647 = vmatpush1.msra.mxu0 0.0
    %648 = vmatprep.subr.mxu0 0.0
    %649 = vmatpush1.msra.mxu0 0.0
    %650 = vmatprep.subr.mxu0 0.0
    %651 = vmatpush1.msra.mxu0 0.0
    %652 = vmatprep.subr.mxu0 0.0
    %653 = vmatpush1.msra.mxu0 0.0
    %654 = vmatprep.subr.mxu0 0.0
    %655 = vmatpush1.msra.mxu0 %v630
    %656 = vmatprep.subr.mxu0 0.0
    %657 = vmatpush1.msra.mxu0 %v629
    %658 = vmatprep.subr.mxu0 0.0
    %659 = vmatpush1.msra.mxu0 %v628
    %660 = vmatprep.subr.mxu0 0.0
    %661 = vmatpush1.msra.mxu0 %v627
    %662 = vmatprep.subr.mxu0 0.0
    %663 = vmatpush1.msra.mxu0 %v626
    %664 = vmatprep.subr.mxu0 0.0
    %665 = vmatpush1.msra.mxu0 %v625
    %666 = vmatprep.subr.mxu0 0.0
    %667 = vmatpush1.msra.mxu0 %v624
    %668 = vmatprep.subr.mxu0 0.0
    %669 = vmatpush1.msra.mxu0 %v623
    %670 = vmatprep.subr.mxu0 0.0
    %671 = vmatpush2.msra.mxu0 0.0
    %672 = vmatprep.subr.mxu0 0.0
    %673 = vmatpush2.msra.mxu0 0.0
    %674 = vmatprep.subr.mxu0 0.0
    %675 = vmatpush2.msra.mxu0 0.0
    %676 = vmatprep.subr.mxu0 0.0
    %677 = vmatpush2.msra.mxu0 0.0
    %678 = vmatprep.subr.mxu0 0.0
    %679 = vmatpush2.msra.mxu0 0.0
    %680 = vmatprep.subr.mxu0 0.0
    %681 = vmatpush2.msra.mxu0 0.0
    %682 = vmatprep.subr.mxu0 0.0
    %683 = vmatpush2.msra.mxu0 0.0
    %684 = vmatprep.subr.mxu0 0.0
    %685 = vmatpush2.msra.mxu0 0.0
    %686 = vmatprep.subr.mxu0 0.0
    %687 = vmatpush2.msra.mxu0 0.0
    %688 = vmatprep.subr.mxu0 0.0
    %689 = vmatpush2.msra.mxu0 0.0
    %690 = vmatprep.subr.mxu0 0.0
    %691 = vmatpush2.msra.mxu0 0.0
    %692 = vmatprep.subr.mxu0 0.0
    %693 = vmatpush2.msra.mxu0 0.0
    %694 = vmatprep.subr.mxu0 0.0
    %695 = vmatpush2.msra.mxu0 0.0
    %696 = vmatprep.subr.mxu0 0.0
    %697 = vmatpush2.msra.mxu0 0.0
    %698 = vmatprep.subr.mxu0 0.0
    %699 = vmatpush2.msra.mxu0 0.0
    %700 = vmatprep.subr.mxu0 0.0
    %701 = vmatpush2.msra.mxu0 0.0
    %702 = vmatprep.mubr.f32.mxu0 0.0
    %703 = vmatmul.mubr.f32.gmra.mxu0 %v633
    %v704 = vpop.f32.mrf.mxu0
    %v705 = vadd.f32 0.0, %v704
    %v706 = vpop.f32.mrf.mxu0
    %707 = vmatprep.mubr.f32.mxu0 0.0
    %708 = vmatmul.mubr.f32.gmra.mxu0 %v636
    %v709 = vpop.f32.mrf.mxu0
    %v710 = vadd.f32 0.0, %v709
    %v711 = vpop.f32.mrf.mxu0
    %712 = vdwg.mxu0
    %v713 = vadd.f32 %v518, %v705
    %v714 = vadd.f32 %v519, %v710
    %v715 = vsel %vm46, %v713, 0.0
    %716 = vadd.xlane.f32.xlu0 %v715
    %v717 = vpop.xlane.xlu0 %716
    %v718 = vsel %vm46, %v714, 0.0
    %719 = vadd.xlane.f32.xlu0 %v718
    %v720 = vpop.xlane.xlu0 %719
    %v721 = vmul.f32 %v717, %v487
    %v722 = vmul.f32 %v720, %v487
    %v723 = vsub.f32 %v713, %v721
    %v724 = vsub.f32 %v714, %v722
    %v725 = vmul.f32 %v723, %v723
    %v726 = vmul.f32 %v724, %v724
    %v727 = vsel %vm46, %v725, 0.0
    %728 = vadd.xlane.f32.xlu0 %v727
    %v729 = vpop.xlane.xlu0 %728
    %v730 = vsel %vm46, %v726, 0.0
    %731 = vadd.xlane.f32.xlu0 %v730
    %v732 = vpop.xlane.xlu0 %731
    %v733 = vmul.f32 %v729, %v487
    %v734 = vmul.f32 %v732, %v487
    %v735 = vadd.f32 %v733, 1e-05
    %v736 = vadd.f32 %v734, 1e-05
    %v737 = vrsqrt.pop %v735
    %v738 = vrsqrt.pop %v736
    %v739 = vmul.f32 %v723, %v737
    %v740 = vmul.f32 %v724, %v738
    %v741 = vlaneseq
    %v742 = vshrl.u32 %v741, 7
    %v743 = vsub.s32 0, %v742
    %v744 = vrot.slane %v477, %v743
    %v745 = vmul.f32 %v739, %v744
    %v746 = vmul.f32 %v740, %v744
    %v747 = vlaneseq
    %v748 = vshrl.u32 %v747, 7
    %v749 = vsub.s32 0, %v748
    %v750 = vrot.slane %v478, %v749
    %v751 = vadd.f32 %v745, %v750
    %v752 = vadd.f32 %v746, %v750
    %v753 = vld [vmem:[%s7] sm:$0xff]
    %v754 = vld [vmem:[%s7 + $0x8] sm:$0xff]
    %v755 = vld [vmem:[%s7 + $0x10] sm:$0xff]
    %v756 = vld [vmem:[%s7 + $0x18] sm:$0xff]
    %v758 = vsel %vm46, %v751, 0
    %v761 = vsel %vm46, %v752, 0
    %763 = vmatprep.subr.mxu0 0.0
    %764 = vmatpush1.msra.mxu0 0.0
    %765 = vmatprep.subr.mxu0 0.0
    %766 = vmatpush1.msra.mxu0 0.0
    %767 = vmatprep.subr.mxu0 0.0
    %768 = vmatpush1.msra.mxu0 0.0
    %769 = vmatprep.subr.mxu0 0.0
    %770 = vmatpush1.msra.mxu0 0.0
    %771 = vmatprep.subr.mxu0 0.0
    %772 = vmatpush1.msra.mxu0 0.0
    %773 = vmatprep.subr.mxu0 0.0
    %774 = vmatpush1.msra.mxu0 0.0
    %775 = vmatprep.subr.mxu0 0.0
    %776 = vmatpush1.msra.mxu0 0.0
    %777 = vmatprep.subr.mxu0 0.0
    %778 = vmatpush1.msra.mxu0 0.0
    %779 = vmatprep.subr.mxu0 0.0
    %780 = vmatpush1.msra.mxu0 0.0
    %781 = vmatprep.subr.mxu0 0.0
    %782 = vmatpush1.msra.mxu0 0.0
    %783 = vmatprep.subr.mxu0 0.0
    %784 = vmatpush1.msra.mxu0 0.0
    %785 = vmatprep.subr.mxu0 0.0
    %786 = vmatpush1.msra.mxu0 0.0
    %787 = vmatprep.subr.mxu0 0.0
    %788 = vmatpush1.msra.mxu0 %v756
    %789 = vmatprep.subr.mxu0 0.0
    %790 = vmatpush1.msra.mxu0 %v755
    %791 = vmatprep.subr.mxu0 0.0
    %792 = vmatpush1.msra.mxu0 %v754
    %793 = vmatprep.subr.mxu0 0.0
    %794 = vmatpush1.msra.mxu0 %v753
    %795 = vmatprep.subr.mxu0 0.0
    %796 = vmatpush2.msra.mxu0 0.0
    %797 = vmatprep.subr.mxu0 0.0
    %798 = vmatpush2.msra.mxu0 0.0
    %799 = vmatprep.subr.mxu0 0.0
    %800 = vmatpush2.msra.mxu0 0.0
    %801 = vmatprep.subr.mxu0 0.0
    %802 = vmatpush2.msra.mxu0 0.0
    %803 = vmatprep.subr.mxu0 0.0
    %804 = vmatpush2.msra.mxu0 0.0
    %805 = vmatprep.subr.mxu0 0.0
    %806 = vmatpush2.msra.mxu0 0.0
    %807 = vmatprep.subr.mxu0 0.0
    %808 = vmatpush2.msra.mxu0 0.0
    %809 = vmatprep.subr.mxu0 0.0
    %810 = vmatpush2.msra.mxu0 0.0
    %811 = vmatprep.subr.mxu0 0.0
    %812 = vmatpush2.msra.mxu0 0.0
    %813 = vmatprep.subr.mxu0 0.0
    %814 = vmatpush2.msra.mxu0 0.0
    %815 = vmatprep.subr.mxu0 0.0
    %816 = vmatpush2.msra.mxu0 0.0
    %817 = vmatprep.subr.mxu0 0.0
    %818 = vmatpush2.msra.mxu0 0.0
    %819 = vmatprep.subr.mxu0 0.0
    %820 = vmatpush2.msra.mxu0 0.0
    %821 = vmatprep.subr.mxu0 0.0
    %822 = vmatpush2.msra.mxu0 0.0
    %823 = vmatprep.subr.mxu0 0.0
    %824 = vmatpush2.msra.mxu0 0.0
    %825 = vmatprep.subr.mxu0 0.0
    %826 = vmatpush2.msra.mxu0 0.0
    %827 = vmatprep.mubr.f32.mxu0 0.0
    %828 = vmatmul.mubr.f32.gmra.mxu0 %v758
    %v829 = vpop.f32.mrf.mxu0
    %v830 = vadd.f32 0.0, %v829
    %v831 = vpop.f32.mrf.mxu0
    %832 = vmatprep.mubr.f32.mxu0 0.0
    %833 = vmatmul.mubr.f32.gmra.mxu0 %v761
    %v834 = vpop.f32.mrf.mxu0
    %v835 = vadd.f32 0.0, %v834
    %v836 = vpop.f32.mrf.mxu0
    %837 = vdwg.mxu0
    %838 = vst [vmem:[#allocation2] sm:$0xff] %v830
    %839 = vst [vmem:[#allocation2 + $0x8] sm:$0xff] %v835
    // Predicated region
    $region34: #{prompt_model_forward.1} parent=1 // pred_check
      _
    $region35: #{prompt_model_forward.1} parent=1 // pred_check_branch
      %841 = sbr.rel (0) target = $region37
    $region36: #{prompt_model_forward.1} parent=1 // pred_region
      %s843 = ssub.s32 256, 256
      %844 = vsyncadd [#allocation3], %s843
      %s845 = sshll.u32 [#allocation2], 4
      %s846 = int_to_ptr.vmem [resolvable:$true] %s845
      %851 = dma.vmem_to_hbm [thread:$0]  %s846, 256, %s8, [#allocation3], 128, 128, 8
    $region37: #{prompt_model_forward.1} parent=1 // pred_fallthru
      _
    // Predicated region
    $region38: #{prompt_model_forward.1} parent=1 // pred_check
      _
    $region39: #{prompt_model_forward.1} parent=1 // pred_check_branch
      %853 = sbr.rel (0) target = $region41
    $region40: #{prompt_model_forward.1} parent=1 // pred_region
      %854 = dma.done [#allocation3], 256
    $region41: #{prompt_model_forward.1} parent=1 // pred_fallthru
      _
    %855 = vsyncpa [#allocation3], 1

</llo_original>
